<compile_context>
chip_gen: v7x
topology: tpu7x:2x2x1
jax: 0.10.0
libtpu: 0.0.40
codegen_flags: <defaults>
</compile_context>

<pallas_src>
import enum
import functools

import jax
import jax.numpy as jnp
from jax.experimental import pallas as pl
from jax.experimental.pallas import tpu as pltpu


class Pad(enum.Enum):
    ZERO = "zero"
    EDGE = "edge"


def _round_up(x, m):
    return ((x + m - 1) // m) * m


@functools.lru_cache(maxsize=None)
def _vmem_capacity_bytes():
    """Per-core VMEM capacity; conservative (v7x) fallback if the query fails."""
    try:
        v = int(getattr(pltpu.get_tpu_info(), "vmem_capacity_bytes", 0))
        if v > 0:
            return v
    except Exception:
        pass
    return 64 * 1024 * 1024


def _default_sizing():
    """(max_tile_bytes, vmem_limit_bytes) tuned per TPU generation."""
    if _vmem_capacity_bytes() >= 96 * 1024 * 1024:        # v5e / v6e: 128 MiB VMEM
        return 8 * 1024 * 1024, 96 * 1024 * 1024
    return 4 * 1024 * 1024, 48 * 1024 * 1024              # v7x: 64 MiB VMEM


def _pick_time_tile(time, dim, itemsize, max_tile_bytes, max_rows=4096):
    """Largest multiple-of-8 row count whose (rows, dim) tile fits max_tile_bytes."""
    limit = min(max_rows, max(8, max_tile_bytes // max(1, dim * itemsize)))
    limit = max(8, (limit // 8) * 8)
    return time if time <= limit else limit


def _fsmn_kernel(*refs, l_order, r_order, kernel_res, time_tile,
                 pad_edge, fix_start, fix_rows, has_l, has_r):
    """One (batch, time-tile) block of the depthwise temporal FIR filter.

    refs = (x_ref, w_ref, [lh_ref], [rh_ref], o_ref, win_ref)
      x_ref  : (1, T, D)    unpadded input tile (input dtype)
      w_ref  : (K, D)       depthwise taps, tap-major, float32
      lh_ref : (1, Lh, D)   left-halo rows for this tile (first l_order rows valid)
      rh_ref : (1, Rh, D)   right-halo rows for this tile (first r_order rows valid)
      o_ref  : (1, T, D)
      win_ref: (1, LA+T+r_order, D) float32 VMEM scratch (padded window)
    """
    it = iter(refs)
    x_ref = next(it)
    w_ref = next(it)
    lh_ref = next(it) if has_l else None
    rh_ref = next(it) if has_r else None
    o_ref = next(it)
    win_ref = next(it)

    T = time_tile
    K = l_order + r_order + 1
    LA = _round_up(l_order, 8)          # sublane-aligned offset of the x tile in the window
    D = o_ref.shape[-1]

    # Assemble the conceptually padded window [left halo | x tile | right halo].
    # The dtype upcast to f32 happens exactly once here.
    xf = x_ref[...].astype(jnp.float32)
    win_ref[:, LA:LA + T, :] = xf
    if has_l:
        win_ref[:, LA - l_order:LA, :] = lh_ref[:, :l_order, :].astype(jnp.float32)
    if has_r:
        win_ref[:, LA + T:LA + T + r_order, :] = rh_ref[:, :r_order, :].astype(jnp.float32)

    if fix_rows > 0:
        # Ragged last tile only: rows [fix_start, fix_start + fix_rows) of the
        # tile are past the sequence end and may contain garbage from the
        # out-of-bounds block read.  They are the only garbage rows a *valid*
        # output row can read; overwrite just those with the padding value.
        # (OOB output rows are dropped by Pallas, so nothing else needs masking.)
        @pl.when(pl.program_id(1) == pl.num_programs(1) - 1)
        def _():
            if pad_edge:
                fill = x_ref[:, fix_start - 1:fix_start, :].astype(jnp.float32)
            else:
                fill = jnp.zeros((1, 1, D), jnp.float32)
            win_ref[:, LA + fix_start:LA + fix_start + fix_rows, :] = (
                jnp.broadcast_to(fill, (1, fix_rows, D)))

    # Depthwise conv over time = K unrolled broadcast-FMAs on the VPU (f32),
    # with the first tap peeled (no zero-init + extra add).
    base = LA - l_order
    acc = w_ref[0, :][None, None, :] * win_ref[:, base:base + T, :]
    for k in range(1, K):
        acc = acc + w_ref[k, :][None, None, :] * win_ref[:, base + k:base + k + T, :]
    if kernel_res:
        acc = acc + xf                  # residual reuses the already-resident tile
    o_ref[...] = acc.astype(o_ref.dtype)


def _fsmn_core(x, w_taps, *, l_order, r_order, kernel_res, pad_edge,
               time_tile, max_tile_bytes, vmem_limit_bytes):
    """x: (batch, time, dim); w_taps: (K, dim) float32. Returns (batch, time, dim)."""
    batch, time, dim = x.shape
    K = l_order + r_order + 1

    auto_tile = time_tile is None
    if auto_tile:
        time_tile = _pick_time_tile(time, dim, x.dtype.itemsize, max_tile_bytes)
    time_tile = min(int(time_tile), time)
    if time_tile < time:
        time_tile = max(8, (time_tile // 8) * 8)          # block rows must be multiple of 8
    elif auto_tile and batch == 1 and time > 8:
        # A single grid step would leave one of v7x's two TensorCores idle.
        time_tile = max(8, _round_up(-(-time // 2), 8))

    n_tiles = -(-time // time_tile)
    ragged = (time % time_tile) != 0

    # Static fix range for the ragged last tile (see kernel comment).
    if ragged and r_order > 0:
        fix_start = time - (n_tiles - 1) * time_tile
        fix_rows = min(r_order, time_tile - fix_start)
    else:
        fix_start, fix_rows = 0, 0

    has_l = l_order > 0
    has_r = r_order > 0
    Lh = _round_up(l_order, 8)
    Rh = _round_up(r_order, 8)

    # --- tiny halo side-arrays: a few rows per tile; padding (zero/edge) resolved here ---
    tile_starts = jnp.arange(n_tiles, dtype=jnp.int32) * time_tile

    def gather_halo(rel_offsets):
        idx = tile_starts[:, None] + rel_offsets[None, :]            # (n_tiles, H)
        g = jnp.take(x, jnp.clip(idx, 0, time - 1), axis=1)          # (B, n_tiles, H, D)
        if not pad_edge:
            ok = (idx >= 0) & (idx < time)
            g = jnp.where(ok[None, :, :, None], g, jnp.zeros((), x.dtype))
        return g.reshape(batch, n_tiles * rel_offsets.shape[0], dim)

    operands = [x, w_taps]
    in_specs = [
        pl.BlockSpec((1, time_tile, dim), lambda b, t: (b, t, 0)),
        pl.BlockSpec((K, dim), lambda b, t: (0, 0)),
    ]
    if has_l:
        operands.append(gather_halo(jnp.arange(-l_order, Lh - l_order, dtype=jnp.int32)))
        in_specs.append(pl.BlockSpec((1, Lh, dim), lambda b, t: (b, t, 0)))
    if has_r:
        operands.append(gather_halo(jnp.arange(time_tile, time_tile + Rh, dtype=jnp.int32)))
        in_specs.append(pl.BlockSpec((1, Rh, dim), lambda b, t: (b, t, 0)))

    LA = _round_up(l_order, 8)
    win_rows = LA + time_tile + r_order

    kernel = functools.partial(
        _fsmn_kernel, l_order=l_order, r_order=r_order, kernel_res=kernel_res,
        time_tile=time_tile, pad_edge=pad_edge, fix_start=fix_start,
        fix_rows=fix_rows, has_l=has_l, has_r=has_r)

    return pl.pallas_call(
        kernel,
        out_shape=jax.ShapeDtypeStruct((batch, time, dim), x.dtype),
        grid_spec=pltpu.PrefetchScalarGridSpec(
            num_scalar_prefetch=0,
            grid=(batch, n_tiles),
            in_specs=in_specs,
            out_specs=pl.BlockSpec((1, time_tile, dim), lambda b, t: (b, t, 0)),
            scratch_shapes=[pltpu.VMEM((1, win_rows, dim), jnp.float32)],
        ),
        compiler_params=pltpu.CompilerParams(
            dimension_semantics=("parallel", "parallel"),
            vmem_limit_bytes=vmem_limit_bytes),
    )(*operands)


@functools.partial(jax.jit, static_argnames=(
    "l_order", "r_order", "l_stride", "r_stride", "kernel_res", "padding_mode",
    "time_tile", "max_tile_bytes", "vmem_limit_bytes"))
def fsmn_kernel_parallel(inputs, weight, *, l_order, r_order, l_stride=1, r_stride=1,
                         kernel_res=False, padding_mode=Pad.ZERO, time_tile=None,
                         max_tile_bytes=None, vmem_limit_bytes=None):
    """Forward pass matching FSMNKernelParallel.forward.

    inputs: (batch, time, dim); weight: (dim, 1, K) depthwise Conv1d weight
    (K = l_order + r_order + 1).  Returns (batch, time, dim).
    """
    assert l_stride == 1 and r_stride == 1, "parallel version requires stride 1"
    pm = Pad(padding_mode)
    batch, time, dim = inputs.shape
    K = l_order + r_order + 1
    assert weight.shape == (dim, 1, K)

    if max_tile_bytes is None or vmem_limit_bytes is None:
        auto_tile_bytes, auto_vmem = _default_sizing()
        max_tile_bytes = max_tile_bytes or auto_tile_bytes
        vmem_limit_bytes = vmem_limit_bytes or auto_vmem

    w_taps = jnp.transpose(weight[:, 0, :], (1, 0)).astype(jnp.float32)   # (K, D), tap-major

    core = functools.partial(
        _fsmn_core, l_order=l_order, r_order=r_order, kernel_res=kernel_res,
        pad_edge=(pm is Pad.EDGE), time_tile=time_tile,
        max_tile_bytes=max_tile_bytes, vmem_limit_bytes=vmem_limit_bytes)

    if dim < 128:
        # Small dims only: fold batch into the lane axis for lane-dense stores
        # (exact because the depthwise taps are per-lane).  Larger non-multiple
        # dims run unfolded — the two extra full-tensor transposes would cost
        # more HBM traffic than the masked last lane block saves.
        xf = jnp.transpose(inputs, (1, 0, 2)).reshape(time, batch * dim)[None]
        wf = jnp.tile(w_taps, (1, batch))
        yf = core(xf, wf)
        return jnp.transpose(yf[0].reshape(time, batch, dim), (1, 0, 2))
    return core(inputs, w_taps)


def _reference(inputs, weight, *, l_order, r_order, kernel_res, padding_mode):
    """Pure-JAX reference mirroring the PyTorch forward exactly."""
    pm = Pad(padding_mode)
    K = l_order + r_order + 1
    time = inputs.shape[1]
    mode = "constant" if pm is Pad.ZERO else "edge"
    xpad = jnp.pad(inputs, ((0, 0), (l_order, r_order), (0, 0)), mode=mode)
    y = jnp.zeros(inputs.shape, jnp.float32)
    for k in range(K):
        y = y + weight[:, 0, k][None, None, :] * xpad[:, k:k + time, :]
    if kernel_res:
        y = y + inputs
    return y.astype(inputs.dtype)


if __name__ == "__main__":
    key = jax.random.PRNGKey(0)
    cases = [
        # basic module-like config (folded lanes, batch==1 auto time split)
        dict(batch=2, time=16, dim=32, l=3, r=2, res=True, pad=Pad.ZERO, tile=None, dt=jnp.float32, tol=1e-5),
        # edge padding, ragged time tiling, folded lanes
        dict(batch=2, time=20, dim=32, l=2, r=3, res=False, pad=Pad.EDGE, tile=8, dt=jnp.float32, tol=1e-5),
        # zero padding, ragged time tiling, lane-multiple dim (unfolded path)
        dict(batch=2, time=19, dim=128, l=3, r=2, res=True, pad=Pad.ZERO, tile=8, dt=jnp.float32, tol=1e-5),
        # causal (r_order=0), edge padding, batch==1 auto split, unfolded path
        dict(batch=1, time=16, dim=256, l=4, r=0, res=True, pad=Pad.EDGE, tile=None, dt=jnp.float32, tol=1e-5),
        # bf16 activations, dim >= 128 but not lane-multiple (masked-lane unfolded path)
        dict(batch=1, time=20, dim=160, l=2, r=2, res=True, pad=Pad.ZERO, tile=None, dt=jnp.bfloat16, tol=2e-2),
    ]
    for i, c in enumerate(cases):
        key, kx, kw = jax.random.split(key, 3)
        K = c["l"] + c["r"] + 1
        x = jax.random.normal(kx, (c["batch"], c["time"], c["dim"]), dtype=c["dt"])
        w = jax.random.normal(kw, (c["dim"], 1, K), dtype=jnp.float32) * 0.1

        y = fsmn_kernel_parallel(x, w, l_order=c["l"], r_order=c["r"],
                                 kernel_res=c["res"], padding_mode=c["pad"],
                                 time_tile=c["tile"])
        y = jax.block_until_ready(y)

        y_ref = _reference(x, w, l_order=c["l"], r_order=c["r"],
                           kernel_res=c["res"], padding_mode=c["pad"])
        assert y.shape == x.shape
        err = jnp.max(jnp.abs(y.astype(jnp.float32) - y_ref.astype(jnp.float32)))
        assert jnp.allclose(y.astype(jnp.float32), y_ref.astype(jnp.float32),
                            atol=c["tol"], rtol=c["tol"]), f"case {i} mismatch: max err {err}"

    print("KERNEL_OK")
</pallas_src>

<mosaic_0001>
module attributes {stable_mosaic.version = 11 : i64} {
  func.func @_fsmn_kernel(%arg0: i32, %arg1: i32, %arg2: memref<1x8x64xf32, #tpu.memory_space<vmem>>, %arg3: memref<6x64xf32, #tpu.memory_space<vmem>>, %arg4: memref<1x8x64xf32, #tpu.memory_space<vmem>>, %arg5: memref<1x8x64xf32, #tpu.memory_space<vmem>>, %arg6: memref<1x8x64xf32, #tpu.memory_space<vmem>>, %arg7: memref<1x18x64xf32, #tpu.memory_space<vmem>>) attributes {dimension_semantics = [#tpu.dimension_semantics<parallel>, #tpu.dimension_semantics<parallel>], iteration_bounds = array<i64: 1, 2>, scalar_prefetch = 0 : i64, scratch_operands = 1 : i64, tpu.core_type = #tpu.core_type<tc>, window_params = [{transform_indices = @transform_0, window_bounds = array<i64: 1, 8, 64>}, {pipeline_mode = #tpu.pipeline_mode<synchronous>, transform_indices = @transform_1, window_bounds = array<i64: 6, 64>}, {transform_indices = @transform_2, window_bounds = array<i64: 1, 8, 64>}, {transform_indices = @transform_3, window_bounds = array<i64: 1, 8, 64>}, {transform_indices = @transform_4, window_bounds = array<i64: 1, 8, 64>}]} {
    %c0 = arith.constant 0 : index
    %c0_0 = arith.constant 0 : index
    %c0_1 = arith.constant 0 : index
    %0 = vector.load %arg2[%c0, %c0_0, %c0_1] : memref<1x8x64xf32, #tpu.memory_space<vmem>>, vector<1x8x64xf32>
    %c0_2 = arith.constant 0 : index
    %c8 = arith.constant 8 : index
    %c0_3 = arith.constant 0 : index
    %1 = vector.load %arg7[%c0_2, %c8, %c0_3] : memref<1x18x64xf32, #tpu.memory_space<vmem>>, vector<1x8x64xf32>
    tpu.vector_store %arg7[%c0_2, %c8, %c0_3], %0 {strides = array<i32>} : memref<1x18x64xf32, #tpu.memory_space<vmem>>, vector<1x8x64xf32>,
    %c0_4 = arith.constant 0 : index
    %c0_5 = arith.constant 0 : index
    %c0_6 = arith.constant 0 : index
    %2 = vector.load %arg4[%c0_4, %c0_5, %c0_6] : memref<1x8x64xf32, #tpu.memory_space<vmem>>, vector<1x3x64xf32>
    %c0_7 = arith.constant 0 : index
    %c5 = arith.constant 5 : index
    %c0_8 = arith.constant 0 : index
    %3 = vector.load %arg7[%c0_7, %c5, %c0_8] : memref<1x18x64xf32, #tpu.memory_space<vmem>>, vector<1x3x64xf32>
    tpu.vector_store %arg7[%c0_7, %c5, %c0_8], %2 {strides = array<i32>} : memref<1x18x64xf32, #tpu.memory_space<vmem>>, vector<1x3x64xf32>,
    %c0_9 = arith.constant 0 : index
    %c0_10 = arith.constant 0 : index
    %c0_11 = arith.constant 0 : index
    %4 = vector.load %arg5[%c0_9, %c0_10, %c0_11] : memref<1x8x64xf32, #tpu.memory_space<vmem>>, vector<1x2x64xf32>
    %c0_12 = arith.constant 0 : index
    %c16 = arith.constant 16 : index
    %c0_13 = arith.constant 0 : index
    %5 = vector.load %arg7[%c0_12, %c16, %c0_13] : memref<1x18x64xf32, #tpu.memory_space<vmem>>, vector<1x2x64xf32>
    tpu.vector_store %arg7[%c0_12, %c16, %c0_13], %4 {strides = array<i32>} : memref<1x18x64xf32, #tpu.memory_space<vmem>>, vector<1x2x64xf32>,
    %c0_14 = arith.constant 0 : index
    %c0_15 = arith.constant 0 : index
    %6 = vector.load %arg3[%c0_14, %c0_15] : memref<6x64xf32, #tpu.memory_space<vmem>>, vector<1x64xf32>
    %7 = vector.shape_cast %6 : vector<1x64xf32> to vector<64xf32>
    %8 = vector.shape_cast %7 : vector<64xf32> to vector<1x1x64xf32>
    %c0_16 = arith.constant 0 : index
    %c5_17 = arith.constant 5 : index
    %c0_18 = arith.constant 0 : index
    %9 = vector.load %arg7[%c0_16, %c5_17, %c0_18] : memref<1x18x64xf32, #tpu.memory_space<vmem>>, vector<1x8x64xf32>
    %10 = vector.broadcast %8 : vector<1x1x64xf32> to vector<1x8x64xf32>
    %11 = arith.mulf %10, %9 : vector<1x8x64xf32>
    %c1 = arith.constant 1 : index
    %c0_19 = arith.constant 0 : index
    %12 = vector.load %arg3[%c1, %c0_19] : memref<6x64xf32, #tpu.memory_space<vmem>>, vector<1x64xf32>
    %13 = vector.shape_cast %12 : vector<1x64xf32> to vector<64xf32>
    %14 = vector.shape_cast %13 : vector<64xf32> to vector<1x1x64xf32>
    %c0_20 = arith.constant 0 : index
    %c6 = arith.constant 6 : index
    %c0_21 = arith.constant 0 : index
    %15 = vector.load %arg7[%c0_20, %c6, %c0_21] : memref<1x18x64xf32, #tpu.memory_space<vmem>>, vector<1x8x64xf32>
    %16 = vector.broadcast %14 : vector<1x1x64xf32> to vector<1x8x64xf32>
    %17 = arith.mulf %16, %15 : vector<1x8x64xf32>
    %18 = arith.addf %11, %17 : vector<1x8x64xf32>
    %c2 = arith.constant 2 : index
    %c0_22 = arith.constant 0 : index
    %19 = vector.load %arg3[%c2, %c0_22] : memref<6x64xf32, #tpu.memory_space<vmem>>, vector<1x64xf32>
    %20 = vector.shape_cast %19 : vector<1x64xf32> to vector<64xf32>
    %21 = vector.shape_cast %20 : vector<64xf32> to vector<1x1x64xf32>
    %c0_23 = arith.constant 0 : index
    %c7 = arith.constant 7 : index
    %c0_24 = arith.constant 0 : index
    %22 = vector.load %arg7[%c0_23, %c7, %c0_24] : memref<1x18x64xf32, #tpu.memory_space<vmem>>, vector<1x8x64xf32>
    %23 = vector.broadcast %21 : vector<1x1x64xf32> to vector<1x8x64xf32>
    %24 = arith.mulf %23, %22 : vector<1x8x64xf32>
    %25 = arith.addf %18, %24 : vector<1x8x64xf32>
    %c3 = arith.constant 3 : index
    %c0_25 = arith.constant 0 : index
    %26 = vector.load %arg3[%c3, %c0_25] : memref<6x64xf32, #tpu.memory_space<vmem>>, vector<1x64xf32>
    %27 = vector.shape_cast %26 : vector<1x64xf32> to vector<64xf32>
    %28 = vector.shape_cast %27 : vector<64xf32> to vector<1x1x64xf32>
    %c0_26 = arith.constant 0 : index
    %c8_27 = arith.constant 8 : index
    %c0_28 = arith.constant 0 : index
    %29 = vector.load %arg7[%c0_26, %c8_27, %c0_28] : memref<1x18x64xf32, #tpu.memory_space<vmem>>, vector<1x8x64xf32>
    %30 = vector.broadcast %28 : vector<1x1x64xf32> to vector<1x8x64xf32>
    %31 = arith.mulf %30, %29 : vector<1x8x64xf32>
    %32 = arith.addf %25, %31 : vector<1x8x64xf32>
    %c4 = arith.constant 4 : index
    %c0_29 = arith.constant 0 : index
    %33 = vector.load %arg3[%c4, %c0_29] : memref<6x64xf32, #tpu.memory_space<vmem>>, vector<1x64xf32>
    %34 = vector.shape_cast %33 : vector<1x64xf32> to vector<64xf32>
    %35 = vector.shape_cast %34 : vector<64xf32> to vector<1x1x64xf32>
    %c0_30 = arith.constant 0 : index
    %c9 = arith.constant 9 : index
    %c0_31 = arith.constant 0 : index
    %36 = vector.load %arg7[%c0_30, %c9, %c0_31] : memref<1x18x64xf32, #tpu.memory_space<vmem>>, vector<1x8x64xf32>
    %37 = vector.broadcast %35 : vector<1x1x64xf32> to vector<1x8x64xf32>
    %38 = arith.mulf %37, %36 : vector<1x8x64xf32>
    %39 = arith.addf %32, %38 : vector<1x8x64xf32>
    %c5_32 = arith.constant 5 : index
    %c0_33 = arith.constant 0 : index
    %40 = vector.load %arg3[%c5_32, %c0_33] : memref<6x64xf32, #tpu.memory_space<vmem>>, vector<1x64xf32>
    %41 = vector.shape_cast %40 : vector<1x64xf32> to vector<64xf32>
    %42 = vector.shape_cast %41 : vector<64xf32> to vector<1x1x64xf32>
    %c0_34 = arith.constant 0 : index
    %c10 = arith.constant 10 : index
    %c0_35 = arith.constant 0 : index
    %43 = vector.load %arg7[%c0_34, %c10, %c0_35] : memref<1x18x64xf32, #tpu.memory_space<vmem>>, vector<1x8x64xf32>
    %44 = vector.broadcast %42 : vector<1x1x64xf32> to vector<1x8x64xf32>
    %45 = arith.mulf %44, %43 : vector<1x8x64xf32>
    %46 = arith.addf %39, %45 : vector<1x8x64xf32>
    %47 = arith.addf %46, %0 : vector<1x8x64xf32>
    %c0_36 = arith.constant 0 : index
    %c0_37 = arith.constant 0 : index
    %c0_38 = arith.constant 0 : index
    %48 = vector.load %arg6[%c0_36, %c0_37, %c0_38] : memref<1x8x64xf32, #tpu.memory_space<vmem>>, vector<1x8x64xf32>
    tpu.vector_store %arg6[%c0_36, %c0_37, %c0_38], %47 {strides = array<i32>} : memref<1x8x64xf32, #tpu.memory_space<vmem>>, vector<1x8x64xf32>,
    return
  }
  func.func @transform_0(%arg0: i32, %arg1: i32) -> (i32, i32, i32) {
    %c0_i32 = arith.constant 0 : i32
    %c0_i32_0 = arith.constant 0 : i32
    return %arg0, %arg1, %c0_i32 : i32, i32, i32
  }
  func.func @transform_1(%arg0: i32, %arg1: i32) -> (i32, i32) {
    %c0_i32 = arith.constant 0 : i32
    %c0_i32_0 = arith.constant 0 : i32
    %c0_i32_1 = arith.constant 0 : i32
    return %c0_i32, %c0_i32_0 : i32, i32
  }
  func.func @transform_2(%arg0: i32, %arg1: i32) -> (i32, i32, i32) {
    %c0_i32 = arith.constant 0 : i32
    %c0_i32_0 = arith.constant 0 : i32
    return %arg0, %arg1, %c0_i32 : i32, i32, i32
  }
  func.func @transform_3(%arg0: i32, %arg1: i32) -> (i32, i32, i32) {
    %c0_i32 = arith.constant 0 : i32
    %c0_i32_0 = arith.constant 0 : i32
    return %arg0, %arg1, %c0_i32 : i32, i32, i32
  }
  func.func @transform_4(%arg0: i32, %arg1: i32) -> (i32, i32, i32) {
    %c0_i32 = arith.constant 0 : i32
    %c0_i32_0 = arith.constant 0 : i32
    return %arg0, %arg1, %c0_i32 : i32, i32, i32
  }
}

</mosaic_0001>

<llo_original>
// kernel: tile.9
$region0: #{tile.9}
  %s0 = inlined_call_operand.vmem [shape: f32[6,2,32], index: 0, kind: input, shape index: {}]
  %s1 = inlined_call_operand.vmem [shape: f32[6,64], index: 1, kind: output, shape index: {}]
  $region1: #{tile.9} parent=0
    #allocation0 [shape = 'u8[24576]{0}', space=vmem, size = 0x6000, scoped, tag = 'scoped mem for input reshape']
    %s3 = sshllo.u32 0, 2
    %s4 = smul.addr 2, 5
    %s5 = scalar_lea.vmem %s0, %s4
    %v6 = vld [vmem:[%s5] sm:%s3]
    %s7 = scalar_lea.vmem [#allocation0], 40
    %8 = vst [vmem:[%s7] sm:%s3] %v6
    %s9 = smul.addr 2, 4
    %s10 = scalar_lea.vmem %s0, %s9
    %v11 = vld [vmem:[%s10] sm:%s3]
    %s12 = scalar_lea.vmem [#allocation0], 32
    %13 = vst [vmem:[%s12] sm:%s3] %v11
    %s14 = smul.addr 2, 3
    %s15 = scalar_lea.vmem %s0, %s14
    %v16 = vld [vmem:[%s15] sm:%s3]
    %s17 = scalar_lea.vmem [#allocation0], 24
    %18 = vst [vmem:[%s17] sm:%s3] %v16
    %s19 = smul.addr 2, 2
    %s20 = scalar_lea.vmem %s0, %s19
    %v21 = vld [vmem:[%s20] sm:%s3]
    %s22 = scalar_lea.vmem [#allocation0], 16
    %23 = vst [vmem:[%s22] sm:%s3] %v21
    %s24 = scalar_lea.vmem %s0, 2
    %v25 = vld [vmem:[%s24] sm:%s3]
    %s26 = scalar_lea.vmem [#allocation0], 8
    %27 = vst [vmem:[%s26] sm:%s3] %v25
    %v28 = vld [vmem:[%s0] sm:%s3]
    %29 = vst [vmem:[#allocation0] sm:%s3] %v28
    %v30 = vld [vmem:[#allocation0] ss:$8 sm:$0xf]
    %s31 = smov 48
    %v32 = vld [vmem:[#allocation0] ss:$8 sm:%s31]
    %vm33 = vcmask 1045508
    %v34 = vsel %vm33, %v32, %v30
    %vm35 = vcmask 261120
    %36 = vst.msk [vmem:[%s1] sm:$0x3f] %vm35, %v34
    %s37 = scalar_lea.vmem [#allocation0], 1
    %v38 = vld [vmem:[%s37] ss:$8 sm:$0xf]
    %s39 = scalar_lea.vmem [#allocation0], 1
    %s40 = smov 48
    %v41 = vld [vmem:[%s39] ss:$8 sm:%s40]
    %vm42 = vcmask 1045508
    %v43 = vsel %vm42, %v41, %v38
    %44 = vrot.lane.b32.xlu0 %v43, 32
    %v45 = vpop.permute.xlu0 %44
    %vm46 = vcmask 523520
    %47 = vst.msk [vmem:[%s1] sm:$0x3f] %vm46, %v45

// kernel: squeeze.3
$region0: #{squeeze.3}
  %s0 = inlined_call_operand.vmem [shape: f32[1,16,64], index: 0, kind: input, shape index: {}]
  %s1 = inlined_call_operand.vmem [shape: f32[16,2,32], index: 1, kind: output, shape index: {}]
  $region1: #{squeeze.3} parent=0
    #allocation0 [shape = 'u8[65536]{0}', space=vmem, size = 0x10000, scoped, tag = 'scoped mem for output reshape']
    %v2 = vld [vmem:[%s0] sm:$0xff]
    %vm3 = vcmask 261120
    %4 = vst.msk [vmem:[#allocation0] ss:$8 sm:$0xf] %vm3, %v2
    %5 = vst.msk [vmem:[#allocation0] ss:$8 sm:$0xf0] %vm3, %v2
    %s6 = scalar_lea.vmem %s0, 8
    %v7 = vld [vmem:[%s6] sm:$0xff]
    %vm8 = vcmask 261120
    %s9 = scalar_lea.vmem [#allocation0], 64
    %10 = vst.msk [vmem:[%s9] ss:$8 sm:$0xf] %vm8, %v7
    %s11 = scalar_lea.vmem [#allocation0], 64
    %12 = vst.msk [vmem:[%s11] ss:$8 sm:$0xf0] %vm8, %v7
    %v13 = vld [vmem:[%s0] sm:$0xff]
    %14 = vrot.lane.b32.xlu0 %v13, 96
    %v15 = vpop.permute.xlu0 %14
    %vm16 = vcmask 261120
    %s17 = scalar_lea.vmem [#allocation0], 1
    %18 = vst.msk [vmem:[%s17] ss:$8 sm:$0xf] %vm16, %v15
    %s19 = scalar_lea.vmem [#allocation0], 1
    %20 = vst.msk [vmem:[%s19] ss:$8 sm:$0xf0] %vm16, %v15
    %s21 = scalar_lea.vmem %s0, 8
    %v22 = vld [vmem:[%s21] sm:$0xff]
    %23 = vrot.lane.b32.xlu0 %v22, 96
    %v24 = vpop.permute.xlu0 %23
    %vm25 = vcmask 261120
    %s26 = scalar_lea.vmem [#allocation0], 65
    %27 = vst.msk [vmem:[%s26] ss:$8 sm:$0xf] %vm25, %v24
    %s28 = scalar_lea.vmem [#allocation0], 65
    %29 = vst.msk [vmem:[%s28] ss:$8 sm:$0xf0] %vm25, %v24
    %s31 = sshllo.u32 0, 2
    %v33 = vld [vmem:[#allocation0] sm:%s31]
    %s34 = sshllo.u32 0, 2
    %35 = vst [vmem:[%s1] sm:%s34] %v33
    %s36 = scalar_lea.vmem [#allocation0], 8
    %v37 = vld [vmem:[%s36] sm:%s31]
    %s38 = sshllo.u32 0, 2
    %s39 = scalar_lea.vmem %s1, 2
    %40 = vst [vmem:[%s39] sm:%s38] %v37
    %s41 = scalar_lea.vmem [#allocation0], 16
    %v42 = vld [vmem:[%s41] sm:%s31]
    %s43 = sshllo.u32 0, 2
    %s44 = smul.addr 2, 2
    %s45 = scalar_lea.vmem %s1, %s44
    %46 = vst [vmem:[%s45] sm:%s43] %v42
    %s47 = scalar_lea.vmem [#allocation0], 24
    %v48 = vld [vmem:[%s47] sm:%s31]
    %s49 = sshllo.u32 0, 2
    %s50 = smul.addr 2, 3
    %s51 = scalar_lea.vmem %s1, %s50
    %52 = vst [vmem:[%s51] sm:%s49] %v48
    %s53 = scalar_lea.vmem [#allocation0], 32
    %v54 = vld [vmem:[%s53] sm:%s31]
    %s55 = sshllo.u32 0, 2
    %s56 = smul.addr 2, 4
    %s57 = scalar_lea.vmem %s1, %s56
    %58 = vst [vmem:[%s57] sm:%s55] %v54
    %s59 = scalar_lea.vmem [#allocation0], 40
    %v60 = vld [vmem:[%s59] sm:%s31]
    %s61 = sshllo.u32 0, 2
    %s62 = smul.addr 2, 5
    %s63 = scalar_lea.vmem %s1, %s62
    %64 = vst [vmem:[%s63] sm:%s61] %v60
    %s65 = scalar_lea.vmem [#allocation0], 48
    %v66 = vld [vmem:[%s65] sm:%s31]
    %s67 = sshllo.u32 0, 2
    %s68 = smul.addr 2, 6
    %s69 = scalar_lea.vmem %s1, %s68
    %70 = vst [vmem:[%s69] sm:%s67] %v66
    %s71 = scalar_lea.vmem [#allocation0], 56
    %v72 = vld [vmem:[%s71] sm:%s31]
    %s73 = sshllo.u32 0, 2
    %s74 = smul.addr 2, 7
    %s75 = scalar_lea.vmem %s1, %s74
    %76 = vst [vmem:[%s75] sm:%s73] %v72
    %s77 = scalar_lea.vmem [#allocation0], 64
    %v78 = vld [vmem:[%s77] sm:%s31]
    %s79 = sshllo.u32 0, 2
    %s80 = smul.addr 2, 8
    %s81 = scalar_lea.vmem %s1, %s80
    %82 = vst [vmem:[%s81] sm:%s79] %v78
    %s83 = scalar_lea.vmem [#allocation0], 72
    %v84 = vld [vmem:[%s83] sm:%s31]
    %s85 = sshllo.u32 0, 2
    %s86 = smul.addr 2, 9
    %s87 = scalar_lea.vmem %s1, %s86
    %88 = vst [vmem:[%s87] sm:%s85] %v84
    %s89 = scalar_lea.vmem [#allocation0], 80
    %v90 = vld [vmem:[%s89] sm:%s31]
    %s91 = sshllo.u32 0, 2
    %s92 = smul.addr 2, 10
    %s93 = scalar_lea.vmem %s1, %s92
    %94 = vst [vmem:[%s93] sm:%s91] %v90
    %s95 = scalar_lea.vmem [#allocation0], 88
    %v96 = vld [vmem:[%s95] sm:%s31]
    %s97 = sshllo.u32 0, 2
    %s98 = smul.addr 2, 11
    %s99 = scalar_lea.vmem %s1, %s98
    %100 = vst [vmem:[%s99] sm:%s97] %v96
    %s101 = scalar_lea.vmem [#allocation0], 96
    %v102 = vld [vmem:[%s101] sm:%s31]
    %s103 = sshllo.u32 0, 2
    %s104 = smul.addr 2, 12
    %s105 = scalar_lea.vmem %s1, %s104
    %106 = vst [vmem:[%s105] sm:%s103] %v102
    %s107 = scalar_lea.vmem [#allocation0], 104
    %v108 = vld [vmem:[%s107] sm:%s31]
    %s109 = sshllo.u32 0, 2
    %s110 = smul.addr 2, 13
    %s111 = scalar_lea.vmem %s1, %s110
    %112 = vst [vmem:[%s111] sm:%s109] %v108
    %s113 = scalar_lea.vmem [#allocation0], 112
    %v114 = vld [vmem:[%s113] sm:%s31]
    %s115 = sshllo.u32 0, 2
    %s116 = smul.addr 2, 14
    %s117 = scalar_lea.vmem %s1, %s116
    %118 = vst [vmem:[%s117] sm:%s115] %v114
    %s119 = scalar_lea.vmem [#allocation0], 120
    %v120 = vld [vmem:[%s119] sm:%s31]
    %s121 = sshllo.u32 0, 2
    %s122 = smul.addr 2, 15
    %s123 = scalar_lea.vmem %s1, %s122
    %124 = vst [vmem:[%s123] sm:%s121] %v120

// kernel: fsmn_kernel_parallel.1
$region0: #{fsmn_kernel_parallel.1}
  #allocation0 [shape = 'u32[]', space=smem, size = 0x4, offset = 0x4, fixed_abs, tag = 'smem constant byte address 0x4 - core index']
  #allocation1 [shape = 'u32[144,128]{1,0:T(1,128)}', space=vmem, size = 0x12000, scoped, tag = 'internal scratch']
  #allocation2 [shape = 'f32[1,18,64]{2,1,0:T(8,128)}', space=vmem, size = 0x3000, scoped, tag = 'scratch operand']
  %s0 = inlined_call_operand.vmem [shape: f32[1,16,64], index: 0, kind: input, shape index: {}]
  %s1 = inlined_call_operand.vmem [shape: f32[6,64], index: 1, kind: input, shape index: {}]
  %s2 = inlined_call_operand.vmem [shape: f32[1,16,64], index: 2, kind: input, shape index: {}]
  %s3 = inlined_call_operand.vmem [shape: f32[1,16,64], index: 3, kind: input, shape index: {}]
  %s4 = inlined_call_operand.vmem [shape: f32[1,16,64], index: 4, kind: output, shape index: {}]
  %s5 = sld [smem:[#allocation0]]
  $region49: #{fsmn_kernel_parallel.1} parent=0
    _
  %s7 = ssub.s32 1, %s5
  %s8 = scalar_select 0, %s7, %s5
  loop: start=0, step=1, limit=4
  $region2: #{fsmn_kernel_parallel.1} parent=0 // loop_pre_header
    _
  $region3: #{fsmn_kernel_parallel.1} parent=0 // loop_header
    %s10 = sphi 0, %s14
    %p11 = scmp.ge.s32.totalorder %s10, 4
    %s17 = sphi 0, %s29
    %s18 = sphi 0, %s25
    %s19 = sphi 0, %s17
    %s20 = sphi 0, %s18
    %s21 = sphi 0, %s19
    %s22 = sphi 0, %s20
    %s34 = sphi 0, %s36
    %s37 = sphi 0, %s34
    %s38 = sphi 0, %s37
    %s54 = sphi 0, %s38
    %s58 = sphi 0, %s58
    %s60 = sphi 0, %s58
    %s61 = sphi 0, %s60
    %s75 = sphi 0, %s61
    %s83 = sphi 0, %s85
    %s86 = sphi 0, %s83
    %s87 = sphi 0, %s86
    %s103 = sphi 0, %s87
    %s111 = sphi 0, %s113
    %s114 = sphi 0, %s111
    %s115 = sphi 0, %s114
    %s131 = sphi 0, %s115
    %s139 = sphi 0, %s141
    %s142 = sphi 0, %s139
    %s143 = sphi 0, %s142
    %s159 = sphi 0, %s143
  $region4: #{fsmn_kernel_parallel.1} parent=0 // loop_header_branch
    %13 = sbr.rel (%p11) target = $region8
  $region5: #{fsmn_kernel_parallel.1} parent=0 // loop_body
    %s15 = ssub.s32 %s10, 1
    %s16 = ssub.s32 %s10, 2
    %s23 = sadd.s32 1, %s18
    %p24 = scmp.ge.s32.totalorder %s23, 2
    %s25 = scalar_select %p24, 0, %s23
    %s26 = sadd.s32 1, %s17
    %s27 = scalar_select %p24, %s26, %s17
    %p28 = scmp.ge.s32.totalorder %s27, 1
    %s29 = scalar_select %p28, 0, %s27
    %s30 = ssub.s32 %s17, %s29
    %s31 = ssub.s32 %s18, %s25
    %s32 = sor.u32 %s30, %s31
    %p33 = scmp.eq.s32.totalorder %s32, 0
    %s35 = sadd.s32 %s34, 1
    %s36 = scalar_select %p33, %s34, %s35
    %p39 = pneg %p33
    %p40 = scmp.eq.s32.totalorder %s10, 1
    %p41 = por %p39, %p40
    %p42 = scmp.ne.s32.totalorder %s34, %s37
    %p43 = scmp.eq.s32.totalorder %s10, 0
    %p44 = por %p42, %p43
    %p45 = scmp.ne.s32.totalorder %s34, %s37
    %p46 = scmp.eq.s32.totalorder %s15, 1
    %p47 = por %p45, %p46
    %p48 = scmp.ne.s32.totalorder %s37, %s38
    %p49 = scmp.eq.s32.totalorder %s15, 0
    %p50 = por %p48, %p49
    %p51 = scmp.ne.s32.totalorder %s37, %s38
    %p52 = scmp.eq.s32.totalorder %s16, 1
    %p53 = por %p51, %p52
    %p55 = scmp.ne.s32.totalorder %s38, %s54
    %p56 = scmp.eq.s32.totalorder %s16, 0
    %p57 = por %p55, %p56
    %s59 = sadd.s32 %s58, 1
    %p62 = scmp.eq.s32.totalorder %s10, 1
    %p63 = scmp.ne.s32.totalorder %s58, %s60
    %p64 = scmp.eq.s32.totalorder %s10, 0
    %p65 = por %p63, %p64
    %p66 = scmp.ne.s32.totalorder %s58, %s60
    %p67 = scmp.eq.s32.totalorder %s15, 1
    %p68 = por %p66, %p67
    %p69 = scmp.ne.s32.totalorder %s60, %s61
    %p70 = scmp.eq.s32.totalorder %s15, 0
    %p71 = por %p69, %p70
    %p72 = scmp.ne.s32.totalorder %s60, %s61
    %p73 = scmp.eq.s32.totalorder %s16, 1
    %p74 = por %p72, %p73
    %p76 = scmp.ne.s32.totalorder %s61, %s75
    %p77 = scmp.eq.s32.totalorder %s16, 0
    %p78 = por %p76, %p77
    %s79 = ssub.s32 %s17, %s29
    %s80 = ssub.s32 %s18, %s25
    %s81 = sor.u32 %s79, %s80
    %p82 = scmp.eq.s32.totalorder %s81, 0
    %s84 = sadd.s32 %s83, 1
    %s85 = scalar_select %p82, %s83, %s84
    %p88 = pneg %p82
    %p89 = scmp.eq.s32.totalorder %s10, 1
    %p90 = por %p88, %p89
    %p91 = scmp.ne.s32.totalorder %s83, %s86
    %p92 = scmp.eq.s32.totalorder %s10, 0
    %p93 = por %p91, %p92
    %p94 = scmp.ne.s32.totalorder %s83, %s86
    %p95 = scmp.eq.s32.totalorder %s15, 1
    %p96 = por %p94, %p95
    %p97 = scmp.ne.s32.totalorder %s86, %s87
    %p98 = scmp.eq.s32.totalorder %s15, 0
    %p99 = por %p97, %p98
    %p100 = scmp.ne.s32.totalorder %s86, %s87
    %p101 = scmp.eq.s32.totalorder %s16, 1
    %p102 = por %p100, %p101
    %p104 = scmp.ne.s32.totalorder %s87, %s103
    %p105 = scmp.eq.s32.totalorder %s16, 0
    %p106 = por %p104, %p105
    %s107 = ssub.s32 %s17, %s29
    %s108 = ssub.s32 %s18, %s25
    %s109 = sor.u32 %s107, %s108
    %p110 = scmp.eq.s32.totalorder %s109, 0
    %s112 = sadd.s32 %s111, 1
    %s113 = scalar_select %p110, %s111, %s112
    %p116 = pneg %p110
    %p117 = scmp.eq.s32.totalorder %s10, 1
    %p118 = por %p116, %p117
    %p119 = scmp.ne.s32.totalorder %s111, %s114
    %p120 = scmp.eq.s32.totalorder %s10, 0
    %p121 = por %p119, %p120
    %p122 = scmp.ne.s32.totalorder %s111, %s114
    %p123 = scmp.eq.s32.totalorder %s15, 1
    %p124 = por %p122, %p123
    %p125 = scmp.ne.s32.totalorder %s114, %s115
    %p126 = scmp.eq.s32.totalorder %s15, 0
    %p127 = por %p125, %p126
    %p128 = scmp.ne.s32.totalorder %s114, %s115
    %p129 = scmp.eq.s32.totalorder %s16, 1
    %p130 = por %p128, %p129
    %p132 = scmp.ne.s32.totalorder %s115, %s131
    %p133 = scmp.eq.s32.totalorder %s16, 0
    %p134 = por %p132, %p133
    %s135 = ssub.s32 %s17, %s29
    %s136 = ssub.s32 %s18, %s25
    %s137 = sor.u32 %s135, %s136
    %p138 = scmp.eq.s32.totalorder %s137, 0
    %s140 = sadd.s32 %s139, 1
    %s141 = scalar_select %p138, %s139, %s140
    %p144 = pneg %p138
    %p145 = scmp.eq.s32.totalorder %s10, 1
    %p146 = por %p144, %p145
    %p147 = scmp.ne.s32.totalorder %s139, %s142
    %p148 = scmp.eq.s32.totalorder %s10, 0
    %p149 = por %p147, %p148
    %p150 = scmp.ne.s32.totalorder %s139, %s142
    %p151 = scmp.eq.s32.totalorder %s15, 1
    %p152 = por %p150, %p151
    %p153 = scmp.ne.s32.totalorder %s142, %s143
    %p154 = scmp.eq.s32.totalorder %s15, 0
    %p155 = por %p153, %p154
    %p156 = scmp.ne.s32.totalorder %s142, %s143
    %p157 = scmp.eq.s32.totalorder %s16, 1
    %p158 = por %p156, %p157
    %p160 = scmp.ne.s32.totalorder %s143, %s159
    %p161 = scmp.eq.s32.totalorder %s16, 0
    %p162 = por %p160, %p161
    %p163 = scmp.le.s32.totalorder 1, %s10
    %p164 = scmp.lt.s32.totalorder %s10, 3
    %p165 = pnand %p163, %p164
    %p166 = pneg %p165
    // Predicated region
    $region9: #{fsmn_kernel_parallel.1} parent=5 // pred_check
      _
    $region10: #{fsmn_kernel_parallel.1} parent=5 // pred_check_branch
      %168 = sbr.rel (%p165) target = $region12
    $region11: #{fsmn_kernel_parallel.1} parent=5 // pred_region
      %s169 = ssub.s32 %s10, 1
      // Predicated region
      $region13: #{fsmn_kernel_parallel.1} parent=11 // pred_check
        %p170 = pneg %p71
      $region14: #{fsmn_kernel_parallel.1} parent=11 // pred_check_branch
        %172 = sbr.rel (%p170) target = $region16
      $region15: #{fsmn_kernel_parallel.1} parent=11 // pred_region
        _
      $region16: #{fsmn_kernel_parallel.1} parent=11 // pred_fallthru
        _
    $region12: #{fsmn_kernel_parallel.1} parent=5 // pred_fallthru
      _
    %p173 = scmp.lt.s32.totalorder %s10, 2
    // Predicated region
    $region17: #{fsmn_kernel_parallel.1} parent=5 // pred_check
      %p174 = pneg %p173
    $region18: #{fsmn_kernel_parallel.1} parent=5 // pred_check_branch
      %176 = sbr.rel (%p174) target = $region20
    $region19: #{fsmn_kernel_parallel.1} parent=5 // pred_region
      // Predicated region
      $region21: #{fsmn_kernel_parallel.1} parent=19 // pred_check
        %p177 = pneg %p44
      $region22: #{fsmn_kernel_parallel.1} parent=19 // pred_check_branch
        %179 = sbr.rel (%p177) target = $region24
      $region23: #{fsmn_kernel_parallel.1} parent=19 // pred_region
        %p180 = scmp.lt.s32.totalorder %s17, 0
        %s181 = scalar_select %p180, %s17, 0
        %p182 = scmp.lt.s32.totalorder %s18, 1
        %s183 = scalar_select %p182, %s18, 1
        %s184 = smul.addr %s181, 2
        %s185 = sadd.s32 %s183, %s184
        %s186 = smul.addr %s185, 8
        %s187 = scalar_lea.vmem %s0, %s186
      $region24: #{fsmn_kernel_parallel.1} parent=19 // pred_fallthru
        _
      // Predicated region
      $region25: #{fsmn_kernel_parallel.1} parent=19 // pred_check
        %p188 = pneg %p93
      $region26: #{fsmn_kernel_parallel.1} parent=19 // pred_check_branch
        %190 = sbr.rel (%p188) target = $region28
      $region27: #{fsmn_kernel_parallel.1} parent=19 // pred_region
        %p191 = scmp.lt.s32.totalorder %s17, 0
        %s192 = scalar_select %p191, %s17, 0
        %p193 = scmp.lt.s32.totalorder %s18, 1
        %s194 = scalar_select %p193, %s18, 1
        %s195 = smul.addr %s192, 2
        %s196 = sadd.s32 %s194, %s195
        %s197 = smul.addr %s196, 8
        %s198 = scalar_lea.vmem %s2, %s197
      $region28: #{fsmn_kernel_parallel.1} parent=19 // pred_fallthru
        _
      // Predicated region
      $region29: #{fsmn_kernel_parallel.1} parent=19 // pred_check
        %p199 = pneg %p121
      $region30: #{fsmn_kernel_parallel.1} parent=19 // pred_check_branch
        %201 = sbr.rel (%p199) target = $region32
      $region31: #{fsmn_kernel_parallel.1} parent=19 // pred_region
        %p202 = scmp.lt.s32.totalorder %s17, 0
        %s203 = scalar_select %p202, %s17, 0
        %p204 = scmp.lt.s32.totalorder %s18, 1
        %s205 = scalar_select %p204, %s18, 1
        %s206 = smul.addr %s203, 2
        %s207 = sadd.s32 %s205, %s206
        %s208 = smul.addr %s207, 8
        %s209 = scalar_lea.vmem %s3, %s208
      $region32: #{fsmn_kernel_parallel.1} parent=19 // pred_fallthru
        _
    $region20: #{fsmn_kernel_parallel.1} parent=5 // pred_fallthru
      _
    %p210 = scmp.le.s32.totalorder 1, %s10
    %p211 = scmp.lt.s32.totalorder %s10, 3
    %p212 = pnand %p210, %p211
    %p213 = pneg %p212
    // Predicated region
    $region33: #{fsmn_kernel_parallel.1} parent=5 // pred_check
      _
    $region34: #{fsmn_kernel_parallel.1} parent=5 // pred_check_branch
      %215 = sbr.rel (%p212) target = $region36
    $region35: #{fsmn_kernel_parallel.1} parent=5 // pred_region
      %s216 = ssub.s32 %s10, 1
      %p217 = scmp.lt.s32.totalorder %s19, 0
      %s218 = scalar_select %p217, %s19, 0
      %p219 = scmp.lt.s32.totalorder %s20, 1
      %s220 = scalar_select %p219, %s20, 1
      %s221 = smul.addr %s218, 2
      %s222 = sadd.s32 %s220, %s221
      %s223 = smul.addr %s222, 8
      %s224 = scalar_lea.vmem %s0, %s223
      %p225 = pneg %p50
      %p226 = pneg %p47
      %p227 = pneg %p71
      %p228 = pneg %p68
      %p229 = scmp.lt.s32.totalorder %s19, 0
      %s230 = scalar_select %p229, %s19, 0
      %p231 = scmp.lt.s32.totalorder %s20, 1
      %s232 = scalar_select %p231, %s20, 1
      %s233 = smul.addr %s230, 2
      %s234 = sadd.s32 %s232, %s233
      %s235 = smul.addr %s234, 8
      %s236 = scalar_lea.vmem %s2, %s235
      %p237 = pneg %p99
      %p238 = pneg %p96
      %p239 = scmp.lt.s32.totalorder %s19, 0
      %s240 = scalar_select %p239, %s19, 0
      %p241 = scmp.lt.s32.totalorder %s20, 1
      %s242 = scalar_select %p241, %s20, 1
      %s243 = smul.addr %s240, 2
      %s244 = sadd.s32 %s242, %s243
      %s245 = smul.addr %s244, 8
      %s246 = scalar_lea.vmem %s3, %s245
      %p247 = pneg %p127
      %p248 = pneg %p124
      %p249 = pneg %p155
      %p250 = pneg %p152
      %p251 = scmp.lt.s32.totalorder %s19, 0
      %s252 = scalar_select %p251, %s19, 0
      %p253 = scmp.lt.s32.totalorder %s20, 1
      %s254 = scalar_select %p253, %s20, 1
      %s255 = smul.addr %s252, 2
      %s256 = sadd.s32 %s254, %s255
      %s257 = smul.addr %s256, 8
      %s258 = scalar_lea.vmem %s4, %s257
      %p259 = scmp.lt.s32.totalorder %s19, 0
      %s260 = scalar_select %p259, %s19, 0
      %p261 = scmp.lt.s32.totalorder %s20, 1
      %s262 = scalar_select %p261, %s20, 1
      %s263 = smul.addr %s260, 2
      %s264 = sadd.s32 %s262, %s263
      %s265 = smul.addr %s264, 8
      %s266 = scalar_lea.vmem %s0, %s265
      %p267 = scmp.lt.s32.totalorder %s19, 0
      %s268 = scalar_select %p267, %s19, 0
      %p269 = scmp.lt.s32.totalorder %s20, 1
      %s270 = scalar_select %p269, %s20, 1
      %s271 = smul.addr %s268, 2
      %s272 = sadd.s32 %s270, %s271
      %s273 = smul.addr %s272, 8
      %s274 = scalar_lea.vmem %s2, %s273
      %p275 = scmp.lt.s32.totalorder %s19, 0
      %s276 = scalar_select %p275, %s19, 0
      %p277 = scmp.lt.s32.totalorder %s20, 1
      %s278 = scalar_select %p277, %s20, 1
      %s279 = smul.addr %s276, 2
      %s280 = sadd.s32 %s278, %s279
      %s281 = smul.addr %s280, 8
      %s282 = scalar_lea.vmem %s3, %s281
      %p283 = scmp.lt.s32.totalorder %s19, 0
      %s284 = scalar_select %p283, %s19, 0
      %p285 = scmp.lt.s32.totalorder %s20, 1
      %s286 = scalar_select %p285, %s20, 1
      %s287 = smul.addr %s284, 2
      %s288 = sadd.s32 %s286, %s287
      %s289 = smul.addr %s288, 8
      %s290 = scalar_lea.vmem %s4, %s289
      %v291 = vld [vmem:[%s266] sm:$0xff]
      %vm292 = vcmask 523264
      %293 = vst.msk [vmem:[#allocation2 + $0x8] sm:$0xff] %vm292, %v291
      %v294 = vld [vmem:[%s274] sm:$0x7]
      %vm295 = vcmask 518144
      %296 = vst.msk [vmem:[#allocation2 + $0x5] sm:$0x7] %vm295, %v294
      %v297 = vld [vmem:[%s282] sm:$0x3]
      %vm298 = vcmask 517120
      %299 = vst.msk [vmem:[#allocation2 + $0x10] sm:$0x3] %vm298, %v297
      %v300 = vld [vmem:[%s1] sm:$0x1]
      %v301 = vld [vmem:[#allocation2 + $0x5] sm:$0xff]
      %v302 = vlaneseq
      %v303 = vshrl.u32 %v302, 7
      %v304 = vsub.s32 0, %v303
      %v305 = vrot.slane %v300, %v304
      %v306 = vmul.f32 %v305, %v301
      %v307 = vld [vmem:[%s1 + $0x1] sm:$0x1]
      %v308 = vld [vmem:[#allocation2 + $0x6] sm:$0xff]
      %v309 = vlaneseq
      %v310 = vshrl.u32 %v309, 7
      %v311 = vsub.s32 0, %v310
      %v312 = vrot.slane %v307, %v311
      %v313 = vmul.f32 %v312, %v308
      %v314 = vadd.f32 %v306, %v313
      %v315 = vld [vmem:[%s1 + $0x2] sm:$0x1]
      %v316 = vld [vmem:[#allocation2 + $0x7] sm:$0xff]
      %v317 = vlaneseq
      %v318 = vshrl.u32 %v317, 7
      %v319 = vsub.s32 0, %v318
      %v320 = vrot.slane %v315, %v319
      %v321 = vmul.f32 %v320, %v316
      %v322 = vadd.f32 %v314, %v321
      %v323 = vld [vmem:[%s1 + $0x3] sm:$0x1]
      %v324 = vld [vmem:[#allocation2 + $0x8] sm:$0xff]
      %v325 = vlaneseq
      %v326 = vshrl.u32 %v325, 7
      %v327 = vsub.s32 0, %v326
      %v328 = vrot.slane %v323, %v327
      %v329 = vmul.f32 %v328, %v324
      %v330 = vadd.f32 %v322, %v329
      %v331 = vld [vmem:[%s1 + $0x4] sm:$0x1]
      %v332 = vld [vmem:[#allocation2 + $0x9] sm:$0xff]
      %v333 = vlaneseq
      %v334 = vshrl.u32 %v333, 7
      %v335 = vsub.s32 0, %v334
      %v336 = vrot.slane %v331, %v335
      %v337 = vmul.f32 %v336, %v332
      %v338 = vadd.f32 %v330, %v337
      %v339 = vld [vmem:[%s1 + $0x5] sm:$0x1]
      %v340 = vld [vmem:[#allocation2 + $0xa] sm:$0xff]
      %v341 = vlaneseq
      %v342 = vshrl.u32 %v341, 7
      %v343 = vsub.s32 0, %v342
      %v344 = vrot.slane %v339, %v343
      %v345 = vmul.f32 %v344, %v340
      %v346 = vadd.f32 %v338, %v345
      %v347 = vadd.f32 %v346, %v291
      %348 = vst.msk [vmem:[%s290] sm:$0xff] %vm292, %v347
      %p349 = scmp.lt.s32.totalorder %s19, 0
      %s350 = scalar_select %p349, %s19, 0
      %p351 = scmp.lt.s32.totalorder %s20, 1
      %s352 = scalar_select %p351, %s20, 1
      %s353 = smul.addr %s350, 2
      %s354 = sadd.s32 %s352, %s353
      %s355 = smul.addr %s354, 8
      %s356 = scalar_lea.vmem %s4, %s355
      // Predicated region
      $region37: #{fsmn_kernel_parallel.1} parent=35 // pred_check
        %p357 = pneg %p152
      $region38: #{fsmn_kernel_parallel.1} parent=35 // pred_check_branch
        %359 = sbr.rel (%p357) target = $region40
      $region39: #{fsmn_kernel_parallel.1} parent=35 // pred_region
        _
      $region40: #{fsmn_kernel_parallel.1} parent=35 // pred_fallthru
        _
    $region36: #{fsmn_kernel_parallel.1} parent=5 // pred_fallthru
      _
    %p360 = scmp.le.s32.totalorder 2, %s10
    // Predicated region
    $region41: #{fsmn_kernel_parallel.1} parent=5 // pred_check
      %p361 = pneg %p360
    $region42: #{fsmn_kernel_parallel.1} parent=5 // pred_check_branch
      %363 = sbr.rel (%p361) target = $region44
    $region43: #{fsmn_kernel_parallel.1} parent=5 // pred_region
      %s364 = ssub.s32 %s10, 2
      // Predicated region
      $region45: #{fsmn_kernel_parallel.1} parent=43 // pred_check
        %p365 = pneg %p158
      $region46: #{fsmn_kernel_parallel.1} parent=43 // pred_check_branch
        %367 = sbr.rel (%p365) target = $region48
      $region47: #{fsmn_kernel_parallel.1} parent=43 // pred_region
        %p368 = scmp.lt.s32.totalorder %s21, 0
        %s369 = scalar_select %p368, %s21, 0
        %p370 = scmp.lt.s32.totalorder %s22, 1
        %s371 = scalar_select %p370, %s22, 1
        %s372 = smul.addr %s369, 2
        %s373 = sadd.s32 %s371, %s372
        %s374 = smul.addr %s373, 8
        %s375 = scalar_lea.vmem %s4, %s374
      $region48: #{fsmn_kernel_parallel.1} parent=43 // pred_fallthru
        _
    $region44: #{fsmn_kernel_parallel.1} parent=5 // pred_fallthru
      _
  $region6: #{fsmn_kernel_parallel.1} parent=0 // loop_footer
    %s14 = sadd.s32 1, %s10
  $region7: #{fsmn_kernel_parallel.1} parent=0 // loop_footer_branch
    %9 = sbr.rel target = $region3
  $region8: #{fsmn_kernel_parallel.1} parent=0 // loop_exit
    _

</llo_original>
